<compile_context>
chip_gen: v5e
topology: v5e:2x2
jax: 0.10.0
libtpu: 0.0.40
codegen_flags: <defaults>
</compile_context>

<pallas_src>
import jax
import jax.numpy as jnp
from jax.experimental import pallas as pl
from jax.experimental.pallas import tpu as pltpu

LANES = 128
MAX_BLOCK_ROWS = 2048  # (2048,128) f32 = 1 MiB per input per buffer


def _round_up(x, m):
    return ((x + m - 1) // m) * m


def _iou_partial_kernel(logits_ref, labels_ref, partial_ref):
    # Upcast in-kernel (v5e has no bf16 VPU/EUP); sigmoid runs on the EUP.
    p = jax.nn.sigmoid(logits_ref[...].astype(jnp.float32))
    y = labels_ref[...].astype(jnp.float32)
    # Lane-wise partial sums for this block (single sublane reduce per term);
    # the cross-lane reduction happens once, outside the kernel.
    partial_ref[0:1, :] = jnp.sum(p * y, axis=0, keepdims=True)  # intersection
    partial_ref[1:2, :] = jnp.sum(p + y, axis=0, keepdims=True)  # total


def iou_loss(logits, labels, smooth=1e-5):
    flat_logits = jnp.ravel(logits)
    flat_labels = jnp.ravel(labels)
    n = flat_logits.shape[0]

    # Sublane packing: 8 rows for 32-bit, 16 for 16-bit, 32 for 8-bit dtypes.
    itemsize = min(jnp.dtype(flat_logits.dtype).itemsize,
                   jnp.dtype(flat_labels.dtype).itemsize)
    sublane = 8 * max(1, 4 // max(1, itemsize))

    rows = pl.cdiv(n, LANES)
    block_rows = min(MAX_BLOCK_ROWS, _round_up(rows, sublane))
    padded_rows = _round_up(rows, block_rows)
    n_pad = padded_rows * LANES
    pad = n_pad - n

    if pad:
        # Pad logits with a huge negative (sigmoid -> 0) and labels with 0 so
        # both sums are unaffected — no mask array, no extra HBM stream.
        flat_logits = jnp.pad(flat_logits, (0, pad), constant_values=-1e9)
        flat_labels = jnp.pad(flat_labels, (0, pad), constant_values=0)

    logits2 = flat_logits.reshape(padded_rows, LANES)
    labels2 = flat_labels.reshape(padded_rows, LANES)
    num_blocks = padded_rows // block_rows

    in_spec = pl.BlockSpec((block_rows, LANES), lambda i: (i, 0))
    out_spec = pl.BlockSpec((2, LANES), lambda i: (0, i))

    bytes_in = n_pad * (jnp.dtype(logits2.dtype).itemsize
                        + jnp.dtype(labels2.dtype).itemsize)
    cost = pl.CostEstimate(
        flops=5 * n_pad,                 # mul, add, two reduce-adds, misc
        transcendentals=n_pad,           # one exp per element (sigmoid)
        bytes_accessed=bytes_in + num_blocks * 2 * LANES * 4,
    )

    partial = pl.pallas_call(
        _iou_partial_kernel,
        out_shape=jax.ShapeDtypeStruct((2, num_blocks * LANES), jnp.float32),
        grid_spec=pltpu.PrefetchScalarGridSpec(
            num_scalar_prefetch=0,
            grid=(num_blocks,),
            in_specs=[in_spec, in_spec],
            out_specs=out_spec,
        ),
        compiler_params=pltpu.CompilerParams(
            dimension_semantics=("parallel",)),
        cost_estimate=cost,
    )(logits2, labels2)

    inter = jnp.sum(partial[0])
    total = jnp.sum(partial[1])
    union = total - inter
    return jnp.float32(1.0) - (inter + smooth) / (union + smooth)


def iou_loss_ref(logits, labels, smooth=1e-5):
    p = jax.nn.sigmoid(logits.astype(jnp.float32)).reshape(-1)
    y = labels.astype(jnp.float32).reshape(-1)
    inter = jnp.sum(p * y)
    union = jnp.sum(p + y) - inter
    return 1.0 - (inter + smooth) / (union + smooth)


if __name__ == "__main__":
    key = jax.random.PRNGKey(0)
    k1, k2 = jax.random.split(key)
    # NCHW-shaped inputs, as the PyTorch module would see from a conv head.
    logits = jax.random.normal(k1, (2, 4, 16, 16), dtype=jnp.float32)
    labels = jax.random.bernoulli(k2, 0.5, (2, 4, 16, 16)).astype(jnp.float32)

    loss = jax.block_until_ready(iou_loss(logits, labels))
    ref = jax.block_until_ready(iou_loss_ref(logits, labels))

    assert jnp.allclose(loss, ref, rtol=1e-5, atol=1e-6), (loss, ref)
    print("KERNEL_OK")
</pallas_src>

<mosaic_0001>
module attributes {stable_mosaic.version = 11 : i64} {
  func.func @_iou_partial_kernel(%arg0: i32, %arg1: memref<16x128xf32, #tpu.memory_space<vmem>>, %arg2: memref<16x128xf32, #tpu.memory_space<vmem>>, %arg3: memref<2x128xf32, #tpu.memory_space<vmem>>) attributes {dimension_semantics = [#tpu.dimension_semantics<parallel>], iteration_bounds = array<i64: 1>, scalar_prefetch = 0 : i64, scratch_operands = 0 : i64, tpu.core_type = #tpu.core_type<tc>, window_params = [{transform_indices = @transform_0, window_bounds = array<i64: 16, 128>}, {transform_indices = @transform_1, window_bounds = array<i64: 16, 128>}, {transform_indices = @transform_2, window_bounds = array<i64: 2, 128>}]} {
    %c0 = arith.constant 0 : index
    %c0_0 = arith.constant 0 : index
    %0 = vector.load %arg1[%c0, %c0_0] : memref<16x128xf32, #tpu.memory_space<vmem>>, vector<16x128xf32>
    %1 = arith.negf %0 : vector<16x128xf32>
    %2 = math.exp %1 : vector<16x128xf32>
    %cst = arith.constant 1.000000e+00 : f32
    %3 = vector.broadcast %cst : f32 to vector<16x128xf32>
    %4 = arith.addf %3, %2 : vector<16x128xf32>
    %5 = arith.divf %3, %4 : vector<16x128xf32>
    %c0_1 = arith.constant 0 : index
    %c0_2 = arith.constant 0 : index
    %6 = vector.load %arg2[%c0_1, %c0_2] : memref<16x128xf32, #tpu.memory_space<vmem>>, vector<16x128xf32>
    %7 = arith.mulf %5, %6 : vector<16x128xf32>
    %cst_3 = arith.constant dense<0.000000e+00> : vector<128xf32>
    %8 = vector.multi_reduction <add>, %7, %cst_3 [0] : vector<16x128xf32> to vector<128xf32>
    %9 = vector.shape_cast %8 : vector<128xf32> to vector<1x128xf32>
    %c0_4 = arith.constant 0 : index
    %c0_5 = arith.constant 0 : index
    %10 = vector.load %arg3[%c0_4, %c0_5] : memref<2x128xf32, #tpu.memory_space<vmem>>, vector<1x128xf32>
    tpu.vector_store %arg3[%c0_4, %c0_5], %9 {strides = array<i32>} : memref<2x128xf32, #tpu.memory_space<vmem>>, vector<1x128xf32>,
    %11 = arith.addf %5, %6 : vector<16x128xf32>
    %cst_6 = arith.constant dense<0.000000e+00> : vector<128xf32>
    %12 = vector.multi_reduction <add>, %11, %cst_6 [0] : vector<16x128xf32> to vector<128xf32>
    %13 = vector.shape_cast %12 : vector<128xf32> to vector<1x128xf32>
    %c1 = arith.constant 1 : index
    %c0_7 = arith.constant 0 : index
    %14 = vector.load %arg3[%c1, %c0_7] : memref<2x128xf32, #tpu.memory_space<vmem>>, vector<1x128xf32>
    tpu.vector_store %arg3[%c1, %c0_7], %13 {strides = array<i32>} : memref<2x128xf32, #tpu.memory_space<vmem>>, vector<1x128xf32>,
    return
  }
  func.func @transform_0(%arg0: i32) -> (i32, i32) {
    %c0_i32 = arith.constant 0 : i32
    %c0_i32_0 = arith.constant 0 : i32
    return %arg0, %c0_i32 : i32, i32
  }
  func.func @transform_1(%arg0: i32) -> (i32, i32) {
    %c0_i32 = arith.constant 0 : i32
    %c0_i32_0 = arith.constant 0 : i32
    return %arg0, %c0_i32 : i32, i32
  }
  func.func @transform_2(%arg0: i32) -> (i32, i32) {
    %c0_i32 = arith.constant 0 : i32
    %c0_i32_0 = arith.constant 0 : i32
    return %c0_i32, %arg0 : i32, i32
  }
}

</mosaic_0001>

<llo_original>
// kernel: tpu_custom_call.1
$region0: #{tpu_custom_call.1}
  #allocation0 [shape = 'u32[]', space=smem, size = 0x4, offset = 0x4, fixed_abs, tag = 'smem constant byte address 0x4 - core index']
  #allocation1 [shape = 'u32[72,128]{1,0:T(1,128)}', space=vmem, size = 0x9000, scoped, tag = 'internal scratch']
  %s0 = inlined_call_operand.hbm [shape: f32[16,128], index: 0, kind: input, shape index: {}]
  %s1 = inlined_call_operand.hbm [shape: f32[16,128], index: 1, kind: input, shape index: {}]
  %s2 = inlined_call_operand.hbm [shape: f32[2,128], index: 2, kind: output, shape index: {}]
  %s3 = sld [smem:[#allocation0]]
  $region26: #{tpu_custom_call.1} parent=0
    _
  %s5 = ssub.s32 1, %s3
  %s6 = scalar_select 0, %s5, %s3
  $region1: #{tpu_custom_call.1} parent=0
    #allocation2 [shape = 'u8[8192]{0}', space=vmem, size = 0x2000, scoped, tag = 'input window, operand 0, single buffered']
    #allocation3 [shape = 's32[1]{0}', space=sflag, size = 0x4, scoped, tag = 'scoped memory for tpu_custom_call.1']
    #allocation4 [shape = 's32[1]{0}', space=sflag, size = 0x4, scoped, tag = 'scoped memory for tpu_custom_call.1']
    #allocation5 [shape = 'u8[8192]{0}', space=vmem, size = 0x2000, scoped, tag = 'input window, operand 1, single buffered']
    #allocation6 [shape = 's32[1]{0}', space=sflag, size = 0x4, scoped, tag = 'scoped memory for tpu_custom_call.1']
    #allocation7 [shape = 'u8[1024]{0}', space=vmem, size = 0x400, scoped, tag = 'output window, operand 0, single buffered']
    %7 = vsyncpa [#allocation3], 0
    %8 = vsyncpa [#allocation6], 0
    %9 = vsyncpa [#allocation4], 0
    // Predicated region
    $region2: #{tpu_custom_call.1} parent=1 // pred_check
      _
    $region3: #{tpu_custom_call.1} parent=1 // pred_check_branch
      %11 = sbr.rel (0) target = $region5
    $region4: #{tpu_custom_call.1} parent=1 // pred_region
      %13 = vsyncadd [#allocation3], 0
      %s14 = sshll.u32 %s0, 4
      %s15 = int_to_ptr.hbm [resolvable:$true] %s14
      %s16 = sshll.u32 [#allocation2], 4
      %s17 = int_to_ptr.vmem [resolvable:$true] %s16
      %22 = dma.hbm_to_vmem [thread:$0]  %s15, 256, %s17, [#allocation3], 128, 128, 8
    $region5: #{tpu_custom_call.1} parent=1 // pred_fallthru
      _
    // Predicated region
    $region6: #{tpu_custom_call.1} parent=1 // pred_check
      _
    $region7: #{tpu_custom_call.1} parent=1 // pred_check_branch
      %24 = sbr.rel (0) target = $region9
    $region8: #{tpu_custom_call.1} parent=1 // pred_region
      %26 = vsyncadd [#allocation6], 0
      %s27 = sshll.u32 %s1, 4
      %s28 = int_to_ptr.hbm [resolvable:$true] %s27
      %s29 = sshll.u32 [#allocation5], 4
      %s30 = int_to_ptr.vmem [resolvable:$true] %s29
      %35 = dma.hbm_to_vmem [thread:$0]  %s28, 256, %s30, [#allocation6], 128, 128, 8
    $region9: #{tpu_custom_call.1} parent=1 // pred_fallthru
      _
    // Predicated region
    $region10: #{tpu_custom_call.1} parent=1 // pred_check
      _
    $region11: #{tpu_custom_call.1} parent=1 // pred_check_branch
      %37 = sbr.rel (0) target = $region13
    $region12: #{tpu_custom_call.1} parent=1 // pred_region
      %39 = dma.done [#allocation3], 256
    $region13: #{tpu_custom_call.1} parent=1 // pred_fallthru
      _
    // Predicated region
    $region14: #{tpu_custom_call.1} parent=1 // pred_check
      _
    $region15: #{tpu_custom_call.1} parent=1 // pred_check_branch
      %41 = sbr.rel (0) target = $region17
    $region16: #{tpu_custom_call.1} parent=1 // pred_region
      %43 = dma.done [#allocation6], 256
    $region17: #{tpu_custom_call.1} parent=1 // pred_fallthru
      _
    %v44 = vld [vmem:[#allocation2] sm:$0xff]
    %v45 = vld [vmem:[#allocation2 + $0x8] sm:$0xff]
    %v46 = vxor.u32 %v44, 2147483648
    %v47 = vxor.u32 %v45, 2147483648
    %v48 = vmul.f32 %v46, 1.442695
    %v49 = vpow.pop %v48
    %v50 = vmul.f32 %v47, 1.442695
    %v51 = vpow.pop %v50
    %v52 = vadd.f32 %v49, 1.0
    %v53 = vadd.f32 %v51, 1.0
    %v54 = vrcp.pop %v52
    %v55 = vmul.f32 %v52, %v54
    %v56 = vsub.f32 1.0, %v55
    %v57 = vmul.f32 %v54, %v56
    %v58 = vadd.f32 %v54, %v57
    %vm59 = vweird.f32 %v52
    %vm60 = vweird.f32 %v54
    %vm61 = vmor %vm59, %vm60
    %v62 = vsel %vm61, %v54, %v58
    %v63 = vand.u32 2147483647, %v52
    %vm64 = vcmp.eq.f32.partialorder %v63, 8.507059e+37
    %v65 = vand.u32 %v52, 2147483648
    %v66 = vor.u32 1.1754944e-38, %v65
    %v67 = vsel %vm64, %v66, %v62
    %v68 = vmul.f32 1.0, %v67
    %v69 = vrcp.pop %v53
    %v70 = vmul.f32 %v53, %v69
    %v71 = vsub.f32 1.0, %v70
    %v72 = vmul.f32 %v69, %v71
    %v73 = vadd.f32 %v69, %v72
    %vm74 = vweird.f32 %v53
    %vm75 = vweird.f32 %v69
    %vm76 = vmor %vm74, %vm75
    %v77 = vsel %vm76, %v69, %v73
    %v78 = vand.u32 2147483647, %v53
    %vm79 = vcmp.eq.f32.partialorder %v78, 8.507059e+37
    %v80 = vand.u32 %v53, 2147483648
    %v81 = vor.u32 1.1754944e-38, %v80
    %v82 = vsel %vm79, %v81, %v77
    %v83 = vmul.f32 1.0, %v82
    %v84 = vld [vmem:[#allocation5] sm:$0xff]
    %v85 = vld [vmem:[#allocation5 + $0x8] sm:$0xff]
    %v86 = vmul.f32 %v68, %v84
    %v87 = vmul.f32 %v83, %v85
    %v88 = vadd.f32 %v86, %v87
    %v89 = vrot.slane %v88, 4
    %v90 = vadd.f32 %v88, %v89
    %v91 = vrot.slane %v90, 2
    %v92 = vadd.f32 %v90, %v91
    %v93 = vrot.slane %v92, 1
    %v94 = vadd.f32 %v92, %v93
    %95 = vst [vmem:[#allocation7] sm:$0x1] %v94
    %v96 = vadd.f32 %v68, %v84
    %v97 = vadd.f32 %v83, %v85
    %v98 = vadd.f32 %v96, %v97
    %v99 = vrot.slane %v98, 4
    %v100 = vadd.f32 %v98, %v99
    %v101 = vrot.slane %v100, 2
    %v102 = vadd.f32 %v100, %v101
    %v103 = vrot.slane %v102, 1
    %v104 = vadd.f32 %v102, %v103
    %105 = vst [vmem:[#allocation7 + $0x1] sm:$0x1] %v104
    // Predicated region
    $region18: #{tpu_custom_call.1} parent=1 // pred_check
      _
    $region19: #{tpu_custom_call.1} parent=1 // pred_check_branch
      %107 = sbr.rel (0) target = $region21
    $region20: #{tpu_custom_call.1} parent=1 // pred_region
      %109 = vsyncadd [#allocation4], 0
      %s111 = sshll.u32 [#allocation7], 4
      %s112 = int_to_ptr.vmem [resolvable:$true] %s111
      %s113 = sshll.u32 %s2, 4
      %s114 = int_to_ptr.hbm [resolvable:$true] %s113
      %116 = dma.vmem_to_hbm [thread:$0]  %s112, 32, %s114, [#allocation4]
    $region21: #{tpu_custom_call.1} parent=1 // pred_fallthru
      _
    // Predicated region
    $region22: #{tpu_custom_call.1} parent=1 // pred_check
      _
    $region23: #{tpu_custom_call.1} parent=1 // pred_check_branch
      %118 = sbr.rel (0) target = $region25
    $region24: #{tpu_custom_call.1} parent=1 // pred_region
      %120 = dma.done [#allocation4], 32
    $region25: #{tpu_custom_call.1} parent=1 // pred_fallthru
      _
    %121 = vsyncpa [#allocation3], 1
    %122 = vsyncpa [#allocation6], 1
    %123 = vsyncpa [#allocation4], 1

</llo_original>
